<compile_context>
chip_gen: v5e
topology: v5e:2x2
jax: 0.10.0
libtpu: 0.0.40
codegen_flags: <defaults>
</compile_context>

<pallas_src>
import functools

import jax
import jax.numpy as jnp
from jax.experimental import pallas as pl
from jax.experimental.pallas import tpu as pltpu

EPS = 1e-8   # matches nn.GroupNorm(1, hidden, eps=1e-08) in the module


# ----------------------------------------------------------------------------
# helpers
# ----------------------------------------------------------------------------
def _vmem_capacity_bytes():
    try:
        return int(pltpu.get_tpu_info().vmem_capacity_bytes)
    except Exception:
        return 64 << 20          # conservative default (v7x per-TC capacity)


def _clamp_vmem_limit(est_bytes):
    cap = _vmem_capacity_bytes()
    return int(min(max(int(est_bytes), 16 << 20), cap - (8 << 20)))


def _pick_t_tile(T, padding, H, cap):
    """Largest 128-multiple tile dividing T that covers the halo and keeps the
    per-pass VMEM footprint comfortably inside the device capacity."""
    budget = max(cap // 4, 8 << 20)
    cands = [c for c in (1024, 512, 256, 128) if c <= T and T % c == 0]
    if T <= 1024 and T not in cands:
        cands.insert(0, T)                        # tiny T: single tile
    cands = [c for c in cands if c >= padding] or [T]
    for c in cands:                               # descending
        if 16 * H * c * 4 <= budget:
            return c
    return cands[-1]


def _const_spec(shape):
    """Constant-index (weight) block: fetched once; single-buffered when the
    installed Pallas supports per-BlockSpec pipeline_mode."""
    idx = lambda b, t: (0,) * len(shape)
    try:
        return pl.BlockSpec(shape, idx, pipeline_mode=pl.Buffered(1))
    except Exception:
        return pl.BlockSpec(shape, idx)


# ----------------------------------------------------------------------------
# pass A: 1x1 conv + PReLU1 + GN1 partial sums
# ----------------------------------------------------------------------------
def _pass_a_kernel(x_ref, alphas_ref, w1_ref, b1_ref, h_ref, stats_ref,
                   *, mxu_dtype, vpu_cin_max):
    x = x_ref[0]                                  # (Cin, tile) f32
    cin = x.shape[0]
    a1 = alphas_ref[0]                            # PReLU1 alpha (SMEM scalar)

    if cin <= vpu_cin_max:
        # Tiny contraction dim: the MXU would pad K to 128/256 -> do Cin
        # broadcast-FMAs on the VPU instead (crossover is generation-tunable).
        w1 = w1_ref[...]
        h = w1[:, 0:1] * x[0:1, :]
        for c in range(1, cin):
            h = h + w1[:, c:c + 1] * x[c:c + 1, :]
        h = h + b1_ref[...]
    else:
        h = jnp.dot(w1_ref[...].astype(mxu_dtype), x.astype(mxu_dtype),
                    preferred_element_type=jnp.float32) + b1_ref[...]
    h = jnp.where(h >= 0, h, a1 * h)

    h_ref[0] = h
    # GN1 partials: reduce over channels (sublanes) only, keep the lane axis;
    # the tiny cross-tile combine happens in f32 in the wrapper.
    stats_ref[0, 0] = jnp.concatenate(
        [jnp.sum(h, axis=0, keepdims=True),
         jnp.sum(h * h, axis=0, keepdims=True)], axis=0)


# ----------------------------------------------------------------------------
# pass B: GN1 affine + depthwise conv (halo) + PReLU2 + GN2 partial sums
# ----------------------------------------------------------------------------
def _pass_b_kernel(*refs, kernel, dilation, padding, t_tile, halo_blk):
    if padding > 0:
        (hl_ref, hc_ref, hr_ref, alphas_ref, ss1_ref, wdb_ref,
         y_ref, stats_ref) = refs
    else:
        hc_ref, alphas_ref, ss1_ref, wdb_ref, y_ref, stats_ref = refs

    a2 = alphas_ref[1]                            # PReLU2 alpha (SMEM scalar)
    scale1 = ss1_ref[0, :, 0:1]                   # (H, 1) GN1 scale
    shift1 = ss1_ref[0, :, 1:2]                   # (H, 1) GN1 shift
    wd = wdb_ref[:, :kernel]                      # (H, K) depthwise taps
    bd = wdb_ref[:, kernel:kernel + 1]            # (H, 1) depthwise bias

    hc = hc_ref[0] * scale1 + shift1              # GN1 affine, center tile

    if padding > 0:
        tt = pl.program_id(1)
        last = pl.num_programs(1) - 1
        # Halo columns from the neighbouring 128-wide chunks of h, GN1-affined;
        # the sequence edges see the depthwise conv's zero padding instead.
        left = jnp.where(tt == 0, 0.0,
                         hl_ref[0, :, halo_blk - padding:] * scale1 + shift1)
        right = jnp.where(tt == last, 0.0,
                          hr_ref[0, :, :padding] * scale1 + shift1)
        hp = jnp.concatenate([left, hc, right], axis=-1)   # (H, tile + 2p)
    else:
        hp = hc

    acc = wd[:, 0:1] * hp[:, 0:t_tile]
    for k in range(1, kernel):
        off = k * dilation
        acc = acc + wd[:, k:k + 1] * hp[:, off:off + t_tile]
    acc = acc + bd

    y = jnp.where(acc >= 0, acc, a2 * acc)        # PReLU2
    y_ref[0] = y
    stats_ref[0, 0] = jnp.concatenate(
        [jnp.sum(y, axis=0, keepdims=True),
         jnp.sum(y * y, axis=0, keepdims=True)], axis=0)


# ----------------------------------------------------------------------------
# pass C: GN2 affine + fused residual|skip 1x1 convs (one MXU matmul)
# ----------------------------------------------------------------------------
def _pass_c_kernel(y_ref, ss2_ref, wout_ref, bout_ref, res_ref, skip_ref,
                   *, cin, cin_pad):
    scale2 = ss2_ref[0, :, 0:1]
    shift2 = ss2_ref[0, :, 1:2]
    yn = y_ref[0] * scale2 + shift2               # (H, tile)
    out = jnp.dot(wout_ref[...], yn.astype(wout_ref.dtype),
                  preferred_element_type=jnp.float32) + bout_ref[...]
    res_ref[0] = out[:cin].astype(res_ref.dtype)
    skip_ref[0] = out[cin_pad:cin_pad + cin].astype(skip_ref.dtype)


# ----------------------------------------------------------------------------
# wrapper
# ----------------------------------------------------------------------------
def depthconv1d_forward(x, params, *, kernel, dilation, padding,
                        mxu_dtype=jnp.bfloat16, t_tile=None, vpu_cin_max=16):
    """x: (B, Cin, T) float32.  Returns (residual, skip), each (B, Cin, T).

    mxu_dtype: operand dtype for the MXU matmuls (accumulation is always f32);
      bf16 default is right for v6e/v7x, pass jnp.float32 for tight checks.
    vpu_cin_max: below this Cin the first 1x1 conv uses Cin broadcast-FMAs on
      the VPU instead of a K-padded MXU matmul (~8 on v5e, ~16-32 on v6e/v7x).
    """
    B, Cin, T = x.shape
    H = params["w1"].shape[0]
    f32 = jnp.float32

    # Non-causal "same"-padding path of the module (output length == T).
    assert 2 * padding == (kernel - 1) * dilation, \
        "kernel implements the non-causal 'same'-padding configuration"
    assert T % 128 == 0, "T must be a multiple of 128"

    cap = _vmem_capacity_bytes()
    if t_tile is None:
        t_tile = _pick_t_tile(T, padding, H, cap)
    assert t_tile % 128 == 0 and T % t_tile == 0
    assert padding <= t_tile, "halo wider than one tile not supported"
    tt_n = T // t_tile

    # PReLU alphas on the scalar path (SMEM), not (1,1) VMEM blocks.
    alphas = jnp.concatenate([params["a1"].reshape(1), params["a2"].reshape(1)])
    # Depthwise taps + bias packed into a single constant block.
    wdb = jnp.concatenate([params["wd"], params["bd"]], axis=1)   # (H, K+1)
    # Fused residual|skip weights, sublane-padded so the skip half starts on
    # an 8-row boundary.
    cin_pad = ((Cin + 7) // 8) * 8
    w_out = (jnp.zeros((2 * cin_pad, H), f32)
             .at[:Cin].set(params["wr"])
             .at[cin_pad:cin_pad + Cin].set(params["ws"])).astype(mxu_dtype)
    b_out = (jnp.zeros((2 * cin_pad, 1), f32)
             .at[:Cin].set(params["br"])
             .at[cin_pad:cin_pad + Cin].set(params["bs"]))

    smem_spec = pl.BlockSpec(memory_space=pltpu.MemorySpace.SMEM)
    tilemap = lambda b, t: (b, 0, t)
    statsmap = lambda b, t: (b, t, 0, 0)
    batchmap = lambda b, t: (b, 0, 0)

    bpe = 4
    est_a = (2 * (Cin + H + 2) * t_tile + H * Cin + H + 3 * H * t_tile) * bpe
    est_b = (2 * (2 * H + 2) * t_tile + 4 * H * 128 + H * (kernel + 5)
             + 5 * H * t_tile + 2 * H * padding) * bpe
    est_c = (2 * (H + 2 * Cin + 2) * t_tile + 2 * cin_pad * (H + 1)
             + (2 * H + 2 * cin_pad) * t_tile) * bpe

    def _cparams(est):
        return pltpu.CompilerParams(
            dimension_semantics=("parallel", "parallel"),
            vmem_limit_bytes=_clamp_vmem_limit(est))

    # ---------------- pass A ----------------
    h_buf, stats1 = pl.pallas_call(
        functools.partial(_pass_a_kernel, mxu_dtype=mxu_dtype,
                          vpu_cin_max=vpu_cin_max),
        out_shape=(jax.ShapeDtypeStruct((B, H, T), f32),
                   jax.ShapeDtypeStruct((B, tt_n, 2, t_tile), f32)),
        grid_spec=pltpu.PrefetchScalarGridSpec(
            num_scalar_prefetch=0,
            grid=(B, tt_n),
            in_specs=[
                pl.BlockSpec((1, Cin, t_tile), tilemap),     # x tile
                smem_spec,                                   # PReLU alphas
                _const_spec((H, Cin)),                       # w1
                _const_spec((H, 1)),                         # b1
            ],
            out_specs=(
                pl.BlockSpec((1, H, t_tile), tilemap),       # h tile
                pl.BlockSpec((1, 1, 2, t_tile), statsmap),   # GN1 partials
            ),
        ),
        compiler_params=_cparams(est_a),
    )(x, alphas, params["w1"], params["b1"])

    # GN1 scale/shift per batch (tiny f32 combine in the wrapper).
    n_elem = float(H * T)
    p1 = jnp.sum(stats1, axis=(1, 3))                        # (B, 2)
    mean1 = p1[:, 0] / n_elem
    var1 = jnp.maximum(p1[:, 1] / n_elem - mean1 * mean1, 0.0)
    inv1 = jax.lax.rsqrt(var1 + EPS)
    scale1 = params["g1"][None, :, 0] * inv1[:, None]        # (B, H)
    shift1 = params["be1"][None, :, 0] - mean1[:, None] * scale1
    ss1 = jnp.stack([scale1, shift1], axis=-1)               # (B, H, 2)

    # ---------------- pass B ----------------
    if padding > 0:
        halo_blk = 128 if padding <= 128 else t_tile
        r = t_tile // halo_blk
        n_hb = T // halo_blk
        h_in_specs = [
            pl.BlockSpec((1, H, halo_blk),
                         lambda b, t: (b, 0, jnp.maximum(t * r - 1, 0))),
            pl.BlockSpec((1, H, t_tile), tilemap),
            pl.BlockSpec((1, H, halo_blk),
                         lambda b, t: (b, 0, jnp.minimum((t + 1) * r, n_hb - 1))),
        ]
        h_args = [h_buf, h_buf, h_buf]
    else:
        halo_blk = t_tile
        h_in_specs = [pl.BlockSpec((1, H, t_tile), tilemap)]
        h_args = [h_buf]

    y_buf, stats2 = pl.pallas_call(
        functools.partial(_pass_b_kernel, kernel=kernel, dilation=dilation,
                          padding=padding, t_tile=t_tile, halo_blk=halo_blk),
        out_shape=(jax.ShapeDtypeStruct((B, H, T), f32),
                   jax.ShapeDtypeStruct((B, tt_n, 2, t_tile), f32)),
        grid_spec=pltpu.PrefetchScalarGridSpec(
            num_scalar_prefetch=0,
            grid=(B, tt_n),
            in_specs=h_in_specs + [
                smem_spec,                                   # PReLU alphas
                pl.BlockSpec((1, H, 2), batchmap),           # GN1 scale|shift
                _const_spec((H, kernel + 1)),                # wd | bd
            ],
            out_specs=(
                pl.BlockSpec((1, H, t_tile), tilemap),       # y tile
                pl.BlockSpec((1, 1, 2, t_tile), statsmap),   # GN2 partials
            ),
        ),
        compiler_params=_cparams(est_b),
    )(*h_args, alphas, ss1, wdb)

    # GN2 scale/shift per batch.
    p2 = jnp.sum(stats2, axis=(1, 3))
    mean2 = p2[:, 0] / n_elem
    var2 = jnp.maximum(p2[:, 1] / n_elem - mean2 * mean2, 0.0)
    inv2 = jax.lax.rsqrt(var2 + EPS)
    scale2 = params["g2"][None, :, 0] * inv2[:, None]
    shift2 = params["be2"][None, :, 0] - mean2[:, None] * scale2
    ss2 = jnp.stack([scale2, shift2], axis=-1)               # (B, H, 2)

    # ---------------- pass C ----------------
    res, skip = pl.pallas_call(
        functools.partial(_pass_c_kernel, cin=Cin, cin_pad=cin_pad),
        out_shape=(jax.ShapeDtypeStruct((B, Cin, T), f32),
                   jax.ShapeDtypeStruct((B, Cin, T), f32)),
        grid_spec=pltpu.PrefetchScalarGridSpec(
            num_scalar_prefetch=0,
            grid=(B, tt_n),
            in_specs=[
                pl.BlockSpec((1, H, t_tile), tilemap),       # y tile
                pl.BlockSpec((1, H, 2), batchmap),           # GN2 scale|shift
                _const_spec((2 * cin_pad, H)),               # res|skip weights
                _const_spec((2 * cin_pad, 1)),               # res|skip bias
            ],
            out_specs=(
                pl.BlockSpec((1, Cin, t_tile), tilemap),
                pl.BlockSpec((1, Cin, t_tile), tilemap),
            ),
        ),
        compiler_params=_cparams(est_c),
    )(y_buf, ss2, w_out, b_out)

    return res, skip


# ----------------------------------------------------------------------------
# pure-JAX reference and parameter construction (for verification)
# ----------------------------------------------------------------------------
def depthconv1d_reference(x, params, *, kernel, dilation, padding):
    w1, b1, a1 = params["w1"], params["b1"], params["a1"][0, 0]
    g1, be1 = params["g1"], params["be1"]
    wd, bd, a2 = params["wd"], params["bd"], params["a2"][0, 0]
    g2, be2 = params["g2"], params["be2"]
    wr, br, ws, bs = params["wr"], params["br"], params["ws"], params["bs"]

    h = jnp.einsum("hc,bct->bht", w1, x, precision="highest") + b1[None]
    h = jnp.where(h >= 0, h, a1 * h)
    mean = jnp.mean(h, axis=(1, 2), keepdims=True)
    var = jnp.mean((h - mean) ** 2, axis=(1, 2), keepdims=True)
    hn = (h - mean) / jnp.sqrt(var + EPS) * g1[None] + be1[None]

    hp = jnp.pad(hn, ((0, 0), (0, 0), (padding, padding)))
    T = x.shape[-1]
    acc = jnp.broadcast_to(bd[None], hn.shape).astype(jnp.float32)
    for k in range(kernel):
        acc = acc + wd[None, :, k:k + 1] * hp[:, :, k * dilation:k * dilation + T]
    y = jnp.where(acc >= 0, acc, a2 * acc)
    mean2 = jnp.mean(y, axis=(1, 2), keepdims=True)
    var2 = jnp.mean((y - mean2) ** 2, axis=(1, 2), keepdims=True)
    yn = (y - mean2) / jnp.sqrt(var2 + EPS) * g2[None] + be2[None]

    res = jnp.einsum("ch,bht->bct", wr, yn, precision="highest") + br[None]
    skp = jnp.einsum("ch,bht->bct", ws, yn, precision="highest") + bs[None]
    return res, skp


def make_params(key, input_channel, hidden_channel, kernel):
    ks = jax.random.split(key, 8)
    f32 = jnp.float32
    return {
        "w1": 0.1 * jax.random.normal(ks[0], (hidden_channel, input_channel), f32),
        "b1": 0.01 * jax.random.normal(ks[1], (hidden_channel, 1), f32),
        "a1": jnp.full((1, 1), 0.25, f32),                   # PReLU default init
        "g1": jnp.ones((hidden_channel, 1), f32),            # GroupNorm affine
        "be1": jnp.zeros((hidden_channel, 1), f32),
        "wd": 0.1 * jax.random.normal(ks[2], (hidden_channel, kernel), f32),
        "bd": 0.01 * jax.random.normal(ks[3], (hidden_channel, 1), f32),
        "a2": jnp.full((1, 1), 0.25, f32),
        "g2": jnp.ones((hidden_channel, 1), f32),
        "be2": jnp.zeros((hidden_channel, 1), f32),
        "wr": 0.1 * jax.random.normal(ks[4], (input_channel, hidden_channel), f32),
        "br": 0.01 * jax.random.normal(ks[5], (input_channel, 1), f32),
        "ws": 0.1 * jax.random.normal(ks[6], (input_channel, hidden_channel), f32),
        "bs": 0.01 * jax.random.normal(ks[7], (input_channel, 1), f32),
    }


if __name__ == "__main__":
    B, Cin, H, T = 2, 4, 32, 256          # T multiple of 128; 2 T-tiles below
    key = jax.random.PRNGKey(0)
    kx, kp = jax.random.split(key)
    x = jax.random.normal(kx, (B, Cin, T), jnp.float32)
    params = make_params(kp, Cin, H, 3)

    # 1) kernel=3, dilation=1, "same" padding, f32 MXU operands, 2 T-tiles
    #    (exercises the cross-tile halo path).
    res, skp = depthconv1d_forward(x, params, kernel=3, dilation=1, padding=1,
                                   mxu_dtype=jnp.float32, t_tile=128)
    jax.block_until_ready((res, skp))
    res_ref, skp_ref = depthconv1d_reference(x, params, kernel=3, dilation=1,
                                             padding=1)
    assert res.shape == (B, Cin, T) and skp.shape == (B, Cin, T)
    assert jnp.allclose(res, res_ref, atol=2e-3, rtol=2e-3)
    assert jnp.allclose(skp, skp_ref, atol=2e-3, rtol=2e-3)

    # 2) dilated depthwise conv (multi-column halos), f32.
    res2, skp2 = depthconv1d_forward(x, params, kernel=3, dilation=2, padding=2,
                                     mxu_dtype=jnp.float32, t_tile=128)
    jax.block_until_ready((res2, skp2))
    res2_ref, skp2_ref = depthconv1d_reference(x, params, kernel=3, dilation=2,
                                               padding=2)
    assert jnp.allclose(res2, res2_ref, atol=2e-3, rtol=2e-3)
    assert jnp.allclose(skp2, skp2_ref, atol=2e-3, rtol=2e-3)

    # 3) default bf16 MXU operands, MXU path for the first conv forced
    #    (vpu_cin_max=0), auto tile pick (single-tile path).
    res3, skp3 = depthconv1d_forward(x, params, kernel=3, dilation=1, padding=1,
                                     vpu_cin_max=0)
    jax.block_until_ready((res3, skp3))
    assert jnp.allclose(res3, res_ref, atol=5e-2, rtol=5e-2)
    assert jnp.allclose(skp3, skp_ref, atol=5e-2, rtol=5e-2)

    print("KERNEL_OK")
</pallas_src>

<mosaic_0001>
module attributes {stable_mosaic.version = 11 : i64} {
  func.func @_pass_a_kernel(%arg0: i32, %arg1: i32, %arg2: memref<1x4x128xf32, #tpu.memory_space<vmem>>, %arg3: memref<2xf32, #tpu.memory_space<smem>>, %arg4: memref<32x4xf32, #tpu.memory_space<vmem>>, %arg5: memref<32x1xf32, #tpu.memory_space<vmem>>, %arg6: memref<1x32x128xf32, #tpu.memory_space<vmem>>, %arg7: memref<1x1x2x128xf32, #tpu.memory_space<vmem>>) attributes {dimension_semantics = [#tpu.dimension_semantics<parallel>, #tpu.dimension_semantics<parallel>], iteration_bounds = array<i64: 2, 2>, scalar_prefetch = 0 : i64, scratch_operands = 0 : i64, tpu.core_type = #tpu.core_type<tc>, window_params = [{transform_indices = @transform_0, window_bounds = array<i64: 1, 4, 128>}, {transform_indices = @transform_1, window_bounds = array<i64: 2>}, {pipeline_mode = #tpu.pipeline_mode<synchronous>, transform_indices = @transform_2, window_bounds = array<i64: 32, 4>}, {pipeline_mode = #tpu.pipeline_mode<synchronous>, transform_indices = @transform_3, window_bounds = array<i64: 32, 1>}, {transform_indices = @transform_4, window_bounds = array<i64: 1, 32, 128>}, {transform_indices = @transform_5, window_bounds = array<i64: 1, 1, 2, 128>}]} {
    %c0 = arith.constant 0 : index
    %c0_0 = arith.constant 0 : index
    %c0_1 = arith.constant 0 : index
    %0 = vector.load %arg2[%c0, %c0_0, %c0_1] : memref<1x4x128xf32, #tpu.memory_space<vmem>>, vector<1x4x128xf32>
    %1 = vector.shape_cast %0 : vector<1x4x128xf32> to vector<4x128xf32>
    %c0_2 = arith.constant 0 : index
    %2 = memref.load %arg3[%c0_2] : memref<2xf32, #tpu.memory_space<smem>>
    %c0_3 = arith.constant 0 : index
    %c0_4 = arith.constant 0 : index
    %3 = vector.load %arg4[%c0_3, %c0_4] : memref<32x4xf32, #tpu.memory_space<vmem>>, vector<32x4xf32>
    %4 = vector.extract_strided_slice %3 {offsets = [0, 0], sizes = [32, 1], strides = [1, 1]} : vector<32x4xf32> to vector<32x1xf32>
    %5 = vector.extract_strided_slice %1 {offsets = [0, 0], sizes = [1, 128], strides = [1, 1]} : vector<4x128xf32> to vector<1x128xf32>
    %6 = vector.broadcast %4 : vector<32x1xf32> to vector<32x128xf32>
    %7 = vector.broadcast %5 : vector<1x128xf32> to vector<32x128xf32>
    %8 = arith.mulf %6, %7 : vector<32x128xf32>
    %9 = vector.extract_strided_slice %3 {offsets = [0, 1], sizes = [32, 1], strides = [1, 1]} : vector<32x4xf32> to vector<32x1xf32>
    %10 = vector.extract_strided_slice %1 {offsets = [1, 0], sizes = [1, 128], strides = [1, 1]} : vector<4x128xf32> to vector<1x128xf32>
    %11 = vector.broadcast %9 : vector<32x1xf32> to vector<32x128xf32>
    %12 = vector.broadcast %10 : vector<1x128xf32> to vector<32x128xf32>
    %13 = arith.mulf %11, %12 : vector<32x128xf32>
    %14 = arith.addf %8, %13 : vector<32x128xf32>
    %15 = vector.extract_strided_slice %3 {offsets = [0, 2], sizes = [32, 1], strides = [1, 1]} : vector<32x4xf32> to vector<32x1xf32>
    %16 = vector.extract_strided_slice %1 {offsets = [2, 0], sizes = [1, 128], strides = [1, 1]} : vector<4x128xf32> to vector<1x128xf32>
    %17 = vector.broadcast %15 : vector<32x1xf32> to vector<32x128xf32>
    %18 = vector.broadcast %16 : vector<1x128xf32> to vector<32x128xf32>
    %19 = arith.mulf %17, %18 : vector<32x128xf32>
    %20 = arith.addf %14, %19 : vector<32x128xf32>
    %21 = vector.extract_strided_slice %3 {offsets = [0, 3], sizes = [32, 1], strides = [1, 1]} : vector<32x4xf32> to vector<32x1xf32>
    %22 = vector.extract_strided_slice %1 {offsets = [3, 0], sizes = [1, 128], strides = [1, 1]} : vector<4x128xf32> to vector<1x128xf32>
    %23 = vector.broadcast %21 : vector<32x1xf32> to vector<32x128xf32>
    %24 = vector.broadcast %22 : vector<1x128xf32> to vector<32x128xf32>
    %25 = arith.mulf %23, %24 : vector<32x128xf32>
    %26 = arith.addf %20, %25 : vector<32x128xf32>
    %c0_5 = arith.constant 0 : index
    %c0_6 = arith.constant 0 : index
    %27 = vector.load %arg5[%c0_5, %c0_6] : memref<32x1xf32, #tpu.memory_space<vmem>>, vector<32x1xf32>
    %28 = vector.broadcast %27 : vector<32x1xf32> to vector<32x128xf32>
    %29 = arith.addf %26, %28 : vector<32x128xf32>
    %cst = arith.constant 0.000000e+00 : f32
    %30 = vector.broadcast %cst : f32 to vector<32x128xf32>
    %31 = arith.cmpf oge, %29, %30 : vector<32x128xf32>
    %32 = vector.broadcast %2 : f32 to vector<32x128xf32>
    %33 = arith.mulf %32, %29 : vector<32x128xf32>
    %34 = arith.select %31, %29, %33 : vector<32x128xi1>, vector<32x128xf32>
    %c0_7 = arith.constant 0 : index
    %c0_8 = arith.constant 0 : index
    %c0_9 = arith.constant 0 : index
    %35 = vector.load %arg6[%c0_7, %c0_8, %c0_9] : memref<1x32x128xf32, #tpu.memory_space<vmem>>, vector<1x32x128xf32>
    %36 = vector.shape_cast %35 : vector<1x32x128xf32> to vector<32x128xf32>
    %37 = vector.shape_cast %34 : vector<32x128xf32> to vector<1x32x128xf32>
    tpu.vector_store %arg6[%c0_7, %c0_8, %c0_9], %37 {strides = array<i32>} : memref<1x32x128xf32, #tpu.memory_space<vmem>>, vector<1x32x128xf32>,
    %cst_10 = arith.constant dense<0.000000e+00> : vector<128xf32>
    %38 = vector.multi_reduction <add>, %34, %cst_10 [0] : vector<32x128xf32> to vector<128xf32>
    %39 = vector.shape_cast %38 : vector<128xf32> to vector<1x128xf32>
    %40 = arith.mulf %34, %34 : vector<32x128xf32>
    %cst_11 = arith.constant dense<0.000000e+00> : vector<128xf32>
    %41 = vector.multi_reduction <add>, %40, %cst_11 [0] : vector<32x128xf32> to vector<128xf32>
    %42 = vector.shape_cast %41 : vector<128xf32> to vector<1x128xf32>
    %43 = tpu.concatenate %39, %42 in 0 : vector<1x128xf32>, vector<1x128xf32> -> vector<2x128xf32>
    %c0_12 = arith.constant 0 : index
    %c0_13 = arith.constant 0 : index
    %c0_14 = arith.constant 0 : index
    %c0_15 = arith.constant 0 : index
    %44 = vector.load %arg7[%c0_12, %c0_13, %c0_14, %c0_15] : memref<1x1x2x128xf32, #tpu.memory_space<vmem>>, vector<1x1x2x128xf32>
    %45 = vector.shape_cast %44 : vector<1x1x2x128xf32> to vector<2x128xf32>
    %46 = vector.shape_cast %43 : vector<2x128xf32> to vector<1x1x2x128xf32>
    tpu.vector_store %arg7[%c0_12, %c0_13, %c0_14, %c0_15], %46 {strides = array<i32>} : memref<1x1x2x128xf32, #tpu.memory_space<vmem>>, vector<1x1x2x128xf32>,
    return
  }
  func.func @transform_0(%arg0: i32, %arg1: i32) -> (i32, i32, i32) {
    %c0_i32 = arith.constant 0 : i32
    %c0_i32_0 = arith.constant 0 : i32
    return %arg0, %c0_i32, %arg1 : i32, i32, i32
  }
  func.func @transform_1(%arg0: i32, %arg1: i32) -> i32 {
    %c0_i32 = arith.constant 0 : i32
    %c0_i32_0 = arith.constant 0 : i32
    return %c0_i32 : i32
  }
  func.func @transform_2(%arg0: i32, %arg1: i32) -> (i32, i32) {
    %c0_i32 = arith.constant 0 : i32
    %c0_i32_0 = arith.constant 0 : i32
    %c0_i32_1 = arith.constant 0 : i32
    return %c0_i32, %c0_i32_0 : i32, i32
  }
  func.func @transform_3(%arg0: i32, %arg1: i32) -> (i32, i32) {
    %c0_i32 = arith.constant 0 : i32
    %c0_i32_0 = arith.constant 0 : i32
    %c0_i32_1 = arith.constant 0 : i32
    return %c0_i32, %c0_i32_0 : i32, i32
  }
  func.func @transform_4(%arg0: i32, %arg1: i32) -> (i32, i32, i32) {
    %c0_i32 = arith.constant 0 : i32
    %c0_i32_0 = arith.constant 0 : i32
    return %arg0, %c0_i32, %arg1 : i32, i32, i32
  }
  func.func @transform_5(%arg0: i32, %arg1: i32) -> (i32, i32, i32, i32) {
    %c0_i32 = arith.constant 0 : i32
    %c0_i32_0 = arith.constant 0 : i32
    %c0_i32_1 = arith.constant 0 : i32
    return %arg0, %arg1, %c0_i32, %c0_i32_0 : i32, i32, i32, i32
  }
}

</mosaic_0001>

<llo_original>
// kernel: tpu_custom_call.1
$region0: #{tpu_custom_call.1}
  #allocation0 [shape = 'u32[]', space=smem, size = 0x4, offset = 0x4, fixed_abs, tag = 'smem constant byte address 0x4 - core index']
  #allocation1 [shape = 'u32[72,128]{1,0:T(1,128)}', space=vmem, size = 0x9000, scoped, tag = 'internal scratch']
  %s0 = inlined_call_operand.vmem [shape: f32[2,4,256], index: 0, kind: input, shape index: {}]
  %s1 = inlined_call_operand.vmem [shape: f32[2], index: 1, kind: input, shape index: {}]
  %s2 = inlined_call_operand.vmem [shape: f32[32,4], index: 2, kind: input, shape index: {}]
  %s3 = inlined_call_operand.vmem [shape: f32[32,1], index: 3, kind: input, shape index: {}]
  %s4 = inlined_call_operand.hbm [shape: f32[2,32,256], index: 4, kind: output, shape index: {0}]
  %s5 = inlined_call_operand.hbm [shape: f32[2,2,2,128], index: 5, kind: output, shape index: {1}]
  %6 = xla_tuple %s4, %s5
  %s7 = sld [smem:[#allocation0]]
  $region61: #{tpu_custom_call.1} parent=0
    _
  %s9 = ssub.s32 1, %s7
  %s10 = scalar_select 0, %s9, %s7
  $region1: #{tpu_custom_call.1} parent=0
    #allocation2 [shape = 'u8[512]{0}', space=smem, size = 0x200, scoped, tag = 'input window, operand 1, single buffered']
    #allocation3 [shape = 's32[2]{0}', space=sflag, size = 0x8, scoped, tag = 'scoped memory for tpu_custom_call.1']
    #allocation4 [shape = 's32[2]{0}', space=sflag, size = 0x8, scoped, tag = 'scoped memory for tpu_custom_call.1']
    #allocation5 [shape = 'u8[32768]{0}', space=vmem, size = 0x8000, scoped, tag = 'output window, operand 0']
    #allocation6 [shape = 'u8[2048]{0}', space=vmem, size = 0x800, scoped, tag = 'output window, operand 1']
    #allocation7 [shape = 's32[2]{0}', space=sflag, size = 0x8, scoped, tag = 'scoped memory for tpu_custom_call.1']
    %11 = vsyncpa [#allocation4], 0
    %12 = vsyncpa [#allocation3], 0
    %s13 = scalar_lea.sflag [#allocation3], 1
    %14 = vsyncpa %s13, 0
    %15 = vsyncpa [#allocation7], 0
    %s16 = scalar_lea.sflag [#allocation7], 1
    %17 = vsyncpa %s16, 0
    loop: start=0, step=1, limit=6
    $region2: #{tpu_custom_call.1} parent=1 // loop_pre_header
      _
    $region3: #{tpu_custom_call.1} parent=1 // loop_header
      %s19 = sphi 0, %s23
      %p20 = scmp.ge.s32.totalorder %s19, 6
      %s26 = sphi 0, %s38
      %s27 = sphi 0, %s34
      %s28 = sphi 0, %s26
      %s29 = sphi 0, %s27
      %s30 = sphi 0, %s28
      %s31 = sphi 0, %s29
      %s43 = sphi 0, %s45
      %s46 = sphi 0, %s43
      %s47 = sphi 0, %s46
      %s63 = sphi 0, %s47
      %s67 = sphi 0, %s67
      %s69 = sphi 0, %s67
      %s70 = sphi 0, %s69
      %s84 = sphi 0, %s70
      %s88 = sphi 0, %s88
      %s90 = sphi 0, %s88
      %s91 = sphi 0, %s90
      %s105 = sphi 0, %s91
      %s109 = sphi 0, %s109
      %s111 = sphi 0, %s109
      %s112 = sphi 0, %s111
      %s126 = sphi 0, %s112
      %s134 = sphi 0, %s136
      %s137 = sphi 0, %s134
      %s138 = sphi 0, %s137
      %s154 = sphi 0, %s138
      %s162 = sphi 0, %s164
      %s165 = sphi 0, %s162
      %s166 = sphi 0, %s165
      %s182 = sphi 0, %s166
    $region4: #{tpu_custom_call.1} parent=1 // loop_header_branch
      %22 = sbr.rel (%p20) target = $region8
    $region5: #{tpu_custom_call.1} parent=1 // loop_body
      %s24 = ssub.s32 %s19, 1
      %s25 = ssub.s32 %s19, 2
      %s32 = sadd.s32 1, %s27
      %p33 = scmp.ge.s32.totalorder %s32, 2
      %s34 = scalar_select %p33, 0, %s32
      %s35 = sadd.s32 1, %s26
      %s36 = scalar_select %p33, %s35, %s26
      %p37 = scmp.ge.s32.totalorder %s36, 2
      %s38 = scalar_select %p37, 0, %s36
      %s39 = ssub.s32 %s26, %s38
      %s40 = ssub.s32 %s27, %s34
      %s41 = sor.u32 %s39, %s40
      %p42 = scmp.eq.s32.totalorder %s41, 0
      %s44 = sadd.s32 %s43, 1
      %s45 = scalar_select %p42, %s43, %s44
      %p48 = pneg %p42
      %p49 = scmp.eq.s32.totalorder %s19, 3
      %p50 = por %p48, %p49
      %p51 = scmp.ne.s32.totalorder %s43, %s46
      %p52 = scmp.eq.s32.totalorder %s19, 0
      %p53 = por %p51, %p52
      %p54 = scmp.ne.s32.totalorder %s43, %s46
      %p55 = scmp.eq.s32.totalorder %s24, 3
      %p56 = por %p54, %p55
      %p57 = scmp.ne.s32.totalorder %s46, %s47
      %p58 = scmp.eq.s32.totalorder %s24, 0
      %p59 = por %p57, %p58
      %p60 = scmp.ne.s32.totalorder %s46, %s47
      %p61 = scmp.eq.s32.totalorder %s25, 3
      %p62 = por %p60, %p61
      %p64 = scmp.ne.s32.totalorder %s47, %s63
      %p65 = scmp.eq.s32.totalorder %s25, 0
      %p66 = por %p64, %p65
      %s68 = sadd.s32 %s67, 1
      %p71 = scmp.eq.s32.totalorder %s19, 3
      %p72 = scmp.ne.s32.totalorder %s67, %s69
      %p73 = scmp.eq.s32.totalorder %s19, 0
      %p74 = por %p72, %p73
      %p75 = scmp.ne.s32.totalorder %s67, %s69
      %p76 = scmp.eq.s32.totalorder %s24, 3
      %p77 = por %p75, %p76
      %p78 = scmp.ne.s32.totalorder %s69, %s70
      %p79 = scmp.eq.s32.totalorder %s24, 0
      %p80 = por %p78, %p79
      %p81 = scmp.ne.s32.totalorder %s69, %s70
      %p82 = scmp.eq.s32.totalorder %s25, 3
      %p83 = por %p81, %p82
      %p85 = scmp.ne.s32.totalorder %s70, %s84
      %p86 = scmp.eq.s32.totalorder %s25, 0
      %p87 = por %p85, %p86
      %s89 = sadd.s32 %s88, 1
      %p92 = scmp.eq.s32.totalorder %s19, 3
      %p93 = scmp.ne.s32.totalorder %s88, %s90
      %p94 = scmp.eq.s32.totalorder %s19, 0
      %p95 = por %p93, %p94
      %p96 = scmp.ne.s32.totalorder %s88, %s90
      %p97 = scmp.eq.s32.totalorder %s24, 3
      %p98 = por %p96, %p97
      %p99 = scmp.ne.s32.totalorder %s90, %s91
      %p100 = scmp.eq.s32.totalorder %s24, 0
      %p101 = por %p99, %p100
      %p102 = scmp.ne.s32.totalorder %s90, %s91
      %p103 = scmp.eq.s32.totalorder %s25, 3
      %p104 = por %p102, %p103
      %p106 = scmp.ne.s32.totalorder %s91, %s105
      %p107 = scmp.eq.s32.totalorder %s25, 0
      %p108 = por %p106, %p107
      %s110 = sadd.s32 %s109, 1
      %p113 = scmp.eq.s32.totalorder %s19, 3
      %p114 = scmp.ne.s32.totalorder %s109, %s111
      %p115 = scmp.eq.s32.totalorder %s19, 0
      %p116 = por %p114, %p115
      %p117 = scmp.ne.s32.totalorder %s109, %s111
      %p118 = scmp.eq.s32.totalorder %s24, 3
      %p119 = por %p117, %p118
      %p120 = scmp.ne.s32.totalorder %s111, %s112
      %p121 = scmp.eq.s32.totalorder %s24, 0
      %p122 = por %p120, %p121
      %p123 = scmp.ne.s32.totalorder %s111, %s112
      %p124 = scmp.eq.s32.totalorder %s25, 3
      %p125 = por %p123, %p124
      %p127 = scmp.ne.s32.totalorder %s112, %s126
      %p128 = scmp.eq.s32.totalorder %s25, 0
      %p129 = por %p127, %p128
      %s130 = ssub.s32 %s26, %s38
      %s131 = ssub.s32 %s27, %s34
      %s132 = sor.u32 %s130, %s131
      %p133 = scmp.eq.s32.totalorder %s132, 0
      %s135 = sadd.s32 %s134, 1
      %s136 = scalar_select %p133, %s134, %s135
      %p139 = pneg %p133
      %p140 = scmp.eq.s32.totalorder %s19, 3
      %p141 = por %p139, %p140
      %p142 = scmp.ne.s32.totalorder %s134, %s137
      %p143 = scmp.eq.s32.totalorder %s19, 0
      %p144 = por %p142, %p143
      %p145 = scmp.ne.s32.totalorder %s134, %s137
      %p146 = scmp.eq.s32.totalorder %s24, 3
      %p147 = por %p145, %p146
      %p148 = scmp.ne.s32.totalorder %s137, %s138
      %p149 = scmp.eq.s32.totalorder %s24, 0
      %p150 = por %p148, %p149
      %p151 = scmp.ne.s32.totalorder %s137, %s138
      %p152 = scmp.eq.s32.totalorder %s25, 3
      %p153 = por %p151, %p152
      %p155 = scmp.ne.s32.totalorder %s138, %s154
      %p156 = scmp.eq.s32.totalorder %s25, 0
      %p157 = por %p155, %p156
      %s158 = ssub.s32 %s26, %s38
      %s159 = ssub.s32 %s27, %s34
      %s160 = sor.u32 %s158, %s159
      %p161 = scmp.eq.s32.totalorder %s160, 0
      %s163 = sadd.s32 %s162, 1
      %s164 = scalar_select %p161, %s162, %s163
      %p167 = pneg %p161
      %p168 = scmp.eq.s32.totalorder %s19, 3
      %p169 = por %p167, %p168
      %p170 = scmp.ne.s32.totalorder %s162, %s165
      %p171 = scmp.eq.s32.totalorder %s19, 0
      %p172 = por %p170, %p171
      %p173 = scmp.ne.s32.totalorder %s162, %s165
      %p174 = scmp.eq.s32.totalorder %s24, 3
      %p175 = por %p173, %p174
      %p176 = scmp.ne.s32.totalorder %s165, %s166
      %p177 = scmp.eq.s32.totalorder %s24, 0
      %p178 = por %p176, %p177
      %p179 = scmp.ne.s32.totalorder %s165, %s166
      %p180 = scmp.eq.s32.totalorder %s25, 3
      %p181 = por %p179, %p180
      %p183 = scmp.ne.s32.totalorder %s166, %s182
      %p184 = scmp.eq.s32.totalorder %s25, 0
      %p185 = por %p183, %p184
      %p186 = scmp.le.s32.totalorder 1, %s19
      %p187 = scmp.lt.s32.totalorder %s19, 5
      %p188 = pnand %p186, %p187
      %p189 = pneg %p188
      // Predicated region
      $region9: #{tpu_custom_call.1} parent=5 // pred_check
        _
      $region10: #{tpu_custom_call.1} parent=5 // pred_check_branch
        %191 = sbr.rel (%p188) target = $region12
      $region11: #{tpu_custom_call.1} parent=5 // pred_region
        %s192 = ssub.s32 %s19, 1
        // Predicated region
        $region13: #{tpu_custom_call.1} parent=11 // pred_check
          %p193 = pneg %p80
        $region14: #{tpu_custom_call.1} parent=11 // pred_check_branch
          %195 = sbr.rel (%p193) target = $region16
        $region15: #{tpu_custom_call.1} parent=11 // pred_region
          %197 = vsyncadd [#allocation4], 0
          %s199 = sshll.u32 %s1, 4
          %s200 = int_to_ptr.vmem [resolvable:$true] %s199
          %202 = dma.vmem_to_smem %s200, 16, [#allocation2], [#allocation4]
        $region16: #{tpu_custom_call.1} parent=11 // pred_fallthru
          _
        // Predicated region
        $region17: #{tpu_custom_call.1} parent=11 // pred_check
          %p203 = pneg %p101
        $region18: #{tpu_custom_call.1} parent=11 // pred_check_branch
          %205 = sbr.rel (%p203) target = $region20
        $region19: #{tpu_custom_call.1} parent=11 // pred_region
          _
        $region20: #{tpu_custom_call.1} parent=11 // pred_fallthru
          _
        // Predicated region
        $region21: #{tpu_custom_call.1} parent=11 // pred_check
          %p206 = pneg %p122
        $region22: #{tpu_custom_call.1} parent=11 // pred_check_branch
          %208 = sbr.rel (%p206) target = $region24
        $region23: #{tpu_custom_call.1} parent=11 // pred_region
          _
        $region24: #{tpu_custom_call.1} parent=11 // pred_fallthru
          _
      $region12: #{tpu_custom_call.1} parent=5 // pred_fallthru
        _
      %p209 = scmp.lt.s32.totalorder %s19, 4
      // Predicated region
      $region25: #{tpu_custom_call.1} parent=5 // pred_check
        %p210 = pneg %p209
      $region26: #{tpu_custom_call.1} parent=5 // pred_check_branch
        %212 = sbr.rel (%p210) target = $region28
      $region27: #{tpu_custom_call.1} parent=5 // pred_region
        // Predicated region
        $region29: #{tpu_custom_call.1} parent=27 // pred_check
          %p213 = pneg %p53
        $region30: #{tpu_custom_call.1} parent=27 // pred_check_branch
          %215 = sbr.rel (%p213) target = $region32
        $region31: #{tpu_custom_call.1} parent=27 // pred_region
          %p216 = scmp.lt.s32.totalorder %s26, 1
          %s217 = scalar_select %p216, %s26, 1
          %p218 = scmp.lt.s32.totalorder %s27, 1
          %s219 = scalar_select %p218, %s27, 1
          %s220 = smul.addr %s217, 2
          %s221 = sadd.s32 %s219, %s220
          %s222 = smul.addr %s221, 4
          %s223 = scalar_lea.vmem %s0, %s222
        $region32: #{tpu_custom_call.1} parent=27 // pred_fallthru
          _
      $region28: #{tpu_custom_call.1} parent=5 // pred_fallthru
        _
      %p224 = scmp.le.s32.totalorder 1, %s19
      %p225 = scmp.lt.s32.totalorder %s19, 5
      %p226 = pnand %p224, %p225
      %p227 = pneg %p226
      // Predicated region
      $region33: #{tpu_custom_call.1} parent=5 // pred_check
        _
      $region34: #{tpu_custom_call.1} parent=5 // pred_check_branch
        %229 = sbr.rel (%p226) target = $region36
      $region35: #{tpu_custom_call.1} parent=5 // pred_region
        %s230 = ssub.s32 %s19, 1
        // Predicated region
        $region37: #{tpu_custom_call.1} parent=35 // pred_check
          %p231 = pneg %p80
        $region38: #{tpu_custom_call.1} parent=35 // pred_check_branch
          %233 = sbr.rel (%p231) target = $region40
        $region39: #{tpu_custom_call.1} parent=35 // pred_region
          %235 = dma.done [#allocation4], 16
        $region40: #{tpu_custom_call.1} parent=35 // pred_fallthru
          _
        %236 = sfence
        %p237 = scmp.lt.s32.totalorder %s28, 1
        %s238 = scalar_select %p237, %s28, 1
        %p239 = scmp.lt.s32.totalorder %s29, 1
        %s240 = scalar_select %p239, %s29, 1
        %s241 = smul.addr %s238, 2
        %s242 = sadd.s32 %s240, %s241
        %s243 = smul.addr %s242, 4
        %s244 = scalar_lea.vmem %s0, %s243
        %p245 = pneg %p59
        %p246 = pneg %p56
        %p247 = pneg %p80
        %p248 = pneg %p77
        %p249 = pneg %p101
        %p250 = pneg %p98
        %p251 = pneg %p122
        %p252 = pneg %p119
        %p253 = pneg %p150
        %p254 = pneg %p147
        %s255 = sand.u32 %s137, 1
        %s256 = scalar_lea.sflag [#allocation3], %s255
        %s257 = sand.u32 %s137, 1
        %s258 = smul.addr %s257, 32
        %s259 = scalar_lea.vmem [#allocation5], %s258
        %p260 = pneg %p178
        %p261 = pneg %p175
        %s262 = sand.u32 %s165, 1
        %s263 = scalar_lea.sflag [#allocation7], %s262
        %s264 = sand.u32 %s165, 1
        %s265 = smul.addr %s264, 2
        %s266 = scalar_lea.vmem [#allocation6], %s265
        %p267 = scmp.lt.s32.totalorder %s28, 1
        %s268 = scalar_select %p267, %s28, 1
        %p269 = scmp.lt.s32.totalorder %s29, 1
        %s270 = scalar_select %p269, %s29, 1
        %s271 = smul.addr %s268, 2
        %s272 = sadd.s32 %s270, %s271
        %s273 = smul.addr %s272, 4
        %s274 = scalar_lea.vmem %s0, %s273
        %v275 = vld [vmem:[%s274] sm:$0xf]
        %s276 = sld [smem:[#allocation2]]
        %v277 = vld [vmem:[%s2] sm:$0xff]
        %v278 = vld [vmem:[%s2 + $0x8] sm:$0xff]
        %v279 = vld [vmem:[%s2 + $0x10] sm:$0xff]
        %v280 = vld [vmem:[%s2 + $0x18] sm:$0xff]
        %282 = vset.pattern.permute.xlu0 0
        %283 = vperm.xlu0 %282, %v277
        %v284 = vpop.permute.xlu0 %283
        %287 = vset.pattern.permute.xlu0 0
        %288 = vperm.xlu0 %287, %v278
        %v289 = vpop.permute.xlu0 %288
        %292 = vset.pattern.permute.xlu0 0
        %293 = vperm.xlu0 %292, %v279
        %v294 = vpop.permute.xlu0 %293
        %297 = vset.pattern.permute.xlu0 0
        %298 = vperm.xlu0 %297, %v280
        %v299 = vpop.permute.xlu0 %298
        %v301 = vperm.slane %v275, 0
        %v302 = vmul.f32 %v284, %v301
        %v303 = vmul.f32 %v289, %v301
        %v304 = vmul.f32 %v294, %v301
        %v305 = vmul.f32 %v299, %v301
        %306 = vset.pattern.permute.xlu0 1
        %307 = vperm.xlu0 %306, %v277
        %v308 = vpop.permute.xlu0 %307
        %310 = vset.pattern.permute.xlu0 1
        %311 = vperm.xlu0 %310, %v278
        %v312 = vpop.permute.xlu0 %311
        %314 = vset.pattern.permute.xlu0 1
        %315 = vperm.xlu0 %314, %v279
        %v316 = vpop.permute.xlu0 %315
        %318 = vset.pattern.permute.xlu0 1
        %319 = vperm.xlu0 %318, %v280
        %v320 = vpop.permute.xlu0 %319
        %v322 = vperm.slane %v275, 1
        %v323 = vmul.f32 %v308, %v322
        %v324 = vmul.f32 %v312, %v322
        %v325 = vmul.f32 %v316, %v322
        %v326 = vmul.f32 %v320, %v322
        %v327 = vadd.f32 %v302, %v323
        %v328 = vadd.f32 %v303, %v324
        %v329 = vadd.f32 %v304, %v325
        %v330 = vadd.f32 %v305, %v326
        %331 = vset.pattern.permute.xlu0 2
        %332 = vperm.xlu0 %331, %v277
        %v333 = vpop.permute.xlu0 %332
        %335 = vset.pattern.permute.xlu0 2
        %336 = vperm.xlu0 %335, %v278
        %v337 = vpop.permute.xlu0 %336
        %339 = vset.pattern.permute.xlu0 2
        %340 = vperm.xlu0 %339, %v279
        %v341 = vpop.permute.xlu0 %340
        %343 = vset.pattern.permute.xlu0 2
        %344 = vperm.xlu0 %343, %v280
        %v345 = vpop.permute.xlu0 %344
        %v347 = vperm.slane %v275, 2
        %v348 = vmul.f32 %v333, %v347
        %v349 = vmul.f32 %v337, %v347
        %v350 = vmul.f32 %v341, %v347
        %v351 = vmul.f32 %v345, %v347
        %v352 = vadd.f32 %v327, %v348
        %v353 = vadd.f32 %v328, %v349
        %v354 = vadd.f32 %v329, %v350
        %v355 = vadd.f32 %v330, %v351
        %356 = vset.pattern.permute.xlu0 3
        %357 = vperm.xlu0 %356, %v277
        %v358 = vpop.permute.xlu0 %357
        %360 = vset.pattern.permute.xlu0 3
        %361 = vperm.xlu0 %360, %v278
        %v362 = vpop.permute.xlu0 %361
        %364 = vset.pattern.permute.xlu0 3
        %365 = vperm.xlu0 %364, %v279
        %v366 = vpop.permute.xlu0 %365
        %368 = vset.pattern.permute.xlu0 3
        %369 = vperm.xlu0 %368, %v280
        %v370 = vpop.permute.xlu0 %369
        %v372 = vperm.slane %v275, 3
        %v373 = vmul.f32 %v358, %v372
        %v374 = vmul.f32 %v362, %v372
        %v375 = vmul.f32 %v366, %v372
        %v376 = vmul.f32 %v370, %v372
        %v377 = vadd.f32 %v352, %v373
        %v378 = vadd.f32 %v353, %v374
        %v379 = vadd.f32 %v354, %v375
        %v380 = vadd.f32 %v355, %v376
        %v381 = vld [vmem:[%s3] sm:$0xff]
        %v382 = vld [vmem:[%s3 + $0x8] sm:$0xff]
        %v383 = vld [vmem:[%s3 + $0x10] sm:$0xff]
        %v384 = vld [vmem:[%s3 + $0x18] sm:$0xff]
        %386 = vset.pattern.permute.xlu0 0
        %387 = vperm.xlu0 %386, %v381
        %v388 = vpop.permute.xlu0 %387
        %391 = vset.pattern.permute.xlu0 0
        %392 = vperm.xlu0 %391, %v382
        %v393 = vpop.permute.xlu0 %392
        %396 = vset.pattern.permute.xlu0 0
        %397 = vperm.xlu0 %396, %v383
        %v398 = vpop.permute.xlu0 %397
        %401 = vset.pattern.permute.xlu0 0
        %402 = vperm.xlu0 %401, %v384
        %v403 = vpop.permute.xlu0 %402
        %v405 = vadd.f32 %v377, %v388
        %v406 = vadd.f32 %v378, %v393
        %v407 = vadd.f32 %v379, %v398
        %v408 = vadd.f32 %v380, %v403
        %vm409 = vcmp.ge.f32.partialorder %v405, 0.0
        %vm410 = vcmp.ge.f32.partialorder %v406, 0.0
        %vm411 = vcmp.ge.f32.partialorder %v407, 0.0
        %vm412 = vcmp.ge.f32.partialorder %v408, 0.0
        %v413 = vstv %s276
        %v414 = vmul.f32 %v413, %v405
        %v415 = vmul.f32 %v413, %v406
        %v416 = vmul.f32 %v413, %v407
        %v417 = vmul.f32 %v413, %v408
        %v418 = vsel %vm409, %v405, %v414
        %v419 = vsel %vm410, %v406, %v415
        %v420 = vsel %vm411, %v407, %v416
        %v421 = vsel %vm412, %v408, %v417
        %422 = vst [vmem:[%s259] sm:$0xff] %v418
        %423 = vst [vmem:[%s259 + $0x8] sm:$0xff] %v419
        %424 = vst [vmem:[%s259 + $0x10] sm:$0xff] %v420
        %425 = vst [vmem:[%s259 + $0x18] sm:$0xff] %v421
        %v426 = vadd.f32 %v418, %v419
        %v427 = vadd.f32 %v426, %v420
        %v428 = vadd.f32 %v427, %v421
        %v429 = vrot.slane %v428, 4
        %v430 = vadd.f32 %v428, %v429
        %v431 = vrot.slane %v430, 2
        %v432 = vadd.f32 %v430, %v431
        %v433 = vrot.slane %v432, 1
        %v434 = vadd.f32 %v432, %v433
        %v435 = vmul.f32 %v418, %v418
        %v436 = vmul.f32 %v419, %v419
        %v437 = vmul.f32 %v420, %v420
        %v438 = vmul.f32 %v421, %v421
        %v439 = vadd.f32 %v435, %v436
        %v440 = vadd.f32 %v439, %v437
        %v441 = vadd.f32 %v440, %v438
        %v442 = vrot.slane %v441, 4
        %v443 = vadd.f32 %v441, %v442
        %v444 = vrot.slane %v443, 2
        %v445 = vadd.f32 %v443, %v444
        %v446 = vrot.slane %v445, 1
        %v447 = vadd.f32 %v445, %v446
        %vm448 = vcmask 1040384
        %v449 = vsel %vm448, %v434, %v447
        %450 = vst [vmem:[%s266] sm:$0x3] %v449
        %s451 = sand.u32 %s137, 1
        %s452 = scalar_lea.sflag [#allocation3], %s451
        %s453 = sand.u32 %s137, 1
        %s454 = smul.addr %s453, 32
        %s455 = scalar_lea.vmem [#allocation5], %s454
        %s456 = sand.u32 %s165, 1
        %s457 = scalar_lea.sflag [#allocation7], %s456
        %s458 = sand.u32 %s165, 1
        %s459 = smul.addr %s458, 2
        %s460 = scalar_lea.vmem [#allocation6], %s459
        // Predicated region
        $region41: #{tpu_custom_call.1} parent=35 // pred_check
          %p461 = pneg %p147
        $region42: #{tpu_custom_call.1} parent=35 // pred_check_branch
          %463 = sbr.rel (%p461) target = $region44
        $region43: #{tpu_custom_call.1} parent=35 // pred_region
          %465 = vsyncadd %s452, 0
          %s466 = smul.addr %s28, 8
          %s467 = sadd.s32 %s29, %s466
          %s468 = smul.addr %s467, 8
          %s469 = scalar_lea.hbm %s4, %s468
          %s470 = sshll.u32 %s455, 4
          %s471 = int_to_ptr.vmem [resolvable:$true] %s470
          %s472 = sshll.u32 %s469, 4
          %s473 = int_to_ptr.hbm [resolvable:$true] %s472
          %478 = dma.vmem_to_hbm [thread:$0]  %s471, 512, %s473, %s452, 128, 256, 8
        $region44: #{tpu_custom_call.1} parent=35 // pred_fallthru
          _
        // Predicated region
        $region45: #{tpu_custom_call.1} parent=35 // pred_check
          %p479 = pneg %p175
        $region46: #{tpu_custom_call.1} parent=35 // pred_check_branch
          %481 = sbr.rel (%p479) target = $region48
        $region47: #{tpu_custom_call.1} parent=35 // pred_region
          %483 = vsyncadd %s457, 0
          %s484 = smul.addr %s28, 2
          %s485 = sadd.s32 %s29, %s484
          %s486 = smul.addr %s485, 2
          %s487 = scalar_lea.hbm %s5, %s486
          %s489 = sshll.u32 %s460, 4
          %s490 = int_to_ptr.vmem [resolvable:$true] %s489
          %s491 = sshll.u32 %s487, 4
          %s492 = int_to_ptr.hbm [resolvable:$true] %s491
          %494 = dma.vmem_to_hbm [thread:$0]  %s490, 32, %s492, %s457
        $region48: #{tpu_custom_call.1} parent=35 // pred_fallthru
          _
      $region36: #{tpu_custom_call.1} parent=5 // pred_fallthru
        _
      %p495 = scmp.le.s32.totalorder 2, %s19
      // Predicated region
      $region49: #{tpu_custom_call.1} parent=5 // pred_check
        %p496 = pneg %p495
      $region50: #{tpu_custom_call.1} parent=5 // pred_check_branch
        %498 = sbr.rel (%p496) target = $region52
      $region51: #{tpu_custom_call.1} parent=5 // pred_region
        %s499 = ssub.s32 %s19, 2
        // Predicated region
        $region53: #{tpu_custom_call.1} parent=51 // pred_check
          %p500 = pneg %p153
        $region54: #{tpu_custom_call.1} parent=51 // pred_check_branch
          %502 = sbr.rel (%p500) target = $region56
        $region55: #{tpu_custom_call.1} parent=51 // pred_region
          %s503 = sand.u32 %s138, 1
          %s504 = scalar_lea.sflag [#allocation3], %s503
          %s505 = sand.u32 %s138, 1
          %s506 = smul.addr %s505, 32
          %s507 = scalar_lea.vmem [#allocation5], %s506
          %509 = dma.done %s504, 512
        $region56: #{tpu_custom_call.1} parent=51 // pred_fallthru
          _
        // Predicated region
        $region57: #{tpu_custom_call.1} parent=51 // pred_check
          %p510 = pneg %p181
        $region58: #{tpu_custom_call.1} parent=51 // pred_check_branch
          %512 = sbr.rel (%p510) target = $region60
        $region59: #{tpu_custom_call.1} parent=51 // pred_region
          %s513 = sand.u32 %s166, 1
          %s514 = scalar_lea.sflag [#allocation7], %s513
          %s515 = sand.u32 %s166, 1
          %s516 = smul.addr %s515, 2
          %s517 = scalar_lea.vmem [#allocation6], %s516
          %519 = dma.done %s514, 32
        $region60: #{tpu_custom_call.1} parent=51 // pred_fallthru
          _
      $region52: #{tpu_custom_call.1} parent=5 // pred_fallthru
        _
    $region6: #{tpu_custom_call.1} parent=1 // loop_footer
      %s23 = sadd.s32 1, %s19
    $region7: #{tpu_custom_call.1} parent=1 // loop_footer_branch
      %18 = sbr.rel target = $region3
    $region8: #{tpu_custom_call.1} parent=1 // loop_exit
      _
    %520 = vsyncpa [#allocation3], 1
    %s521 = scalar_lea.sflag [#allocation3], 1
    %522 = vsyncpa %s521, 1
    %523 = vsyncpa [#allocation7], 1
    %s524 = scalar_lea.sflag [#allocation7], 1
    %525 = vsyncpa %s524, 1
    %526 = vsyncpa [#allocation4], 1
    %s527 = scalar_lea.sflag [#allocation4], 1
    %528 = vsyncpa %s527, 1

</llo_original>
